<compile_context>
chip_gen: v7x
topology: tpu7x:2x2x1
jax: 0.10.0
libtpu: 0.0.40
codegen_flags: <defaults>
</compile_context>

<pallas_src>
import jax
import jax.numpy as jnp
from jax import lax
from jax.experimental import pallas as pl
from jax.experimental.pallas import tpu as pltpu

_VMEM_LIMIT = 48 * 1024 * 1024  # safe on v5e/v6e (128 MiB) and v7x (64 MiB physical)


def _round_up(x, m):
    return ((x + m - 1) // m) * m


def _pad_last(a, target):
    pad = target - a.shape[-1]
    if pad == 0:
        return a
    cfg = [(0, 0)] * (a.ndim - 1) + [(0, pad)]
    return jnp.pad(a, cfg)


def _choose_s_tile(S, max_tile=128):
    # max_tile=128 is v7x-safe; can be raised to 256 on v5e/v6e (128 MiB VMEM).
    if S <= max_tile:
        return S
    for t in range(max_tile, 15, -16):      # prefer bf16-friendly multiples of 16
        if S % t == 0:
            return t
    for t in range(max_tile, 7, -8):
        if S % t == 0:
            return t
    # TODO(synk): awkward npoint (no small divisor) falls back to whole-S blocks; pad S instead
    # if this ever exceeds VMEM.
    return S


# --------------------------------------------------------------------------------------
# 1) farthest point sampling -- whole batch packed on sublanes, one invocation
# --------------------------------------------------------------------------------------
def _make_fps_kernel(npoint, n_points, batch):
    def kernel(start_ref, xs_ref, ys_ref, zs_ref, out_ref):
        xs = xs_ref[...]                                            # [B, N]
        ys = ys_ref[...]
        zs = zs_ref[...]
        lane_n = lax.broadcasted_iota(jnp.int32, (batch, n_points), 1)
        lane_nf = lane_n.astype(jnp.float32)
        lane_s = lax.broadcasted_iota(jnp.int32, (batch, npoint), 1)

        def body(i, carry):
            dist, far, ax, ay, az = carry
            oh = (lane_n == far).astype(jnp.float32)                # one-hot row gather
            cx = jnp.sum(xs * oh, axis=1, keepdims=True)            # [B, 1]
            cy = jnp.sum(ys * oh, axis=1, keepdims=True)
            cz = jnp.sum(zs * oh, axis=1, keepdims=True)
            w = (lane_s == i).astype(jnp.float32)                   # write slot i
            ax = ax + cx * w
            ay = ay + cy * w
            az = az + cz * w
            d = (xs - cx) ** 2 + (ys - cy) ** 2 + (zs - cz) ** 2    # [B, N]
            dist = jnp.minimum(dist, d)
            mx = jnp.max(dist, axis=1, keepdims=True)               # [B, 1]
            cand = jnp.where(dist == mx, lane_nf, jnp.float32(n_points))
            far = jnp.min(cand, axis=1, keepdims=True).astype(jnp.int32)  # first argmax
            return dist, far, ax, ay, az

        far0 = start_ref[...]                                       # [B, 1] int32
        dist0 = jnp.full((batch, n_points), 1e10, jnp.float32)
        z = jnp.zeros((batch, npoint), jnp.float32)
        _, _, ax, ay, az = lax.fori_loop(0, npoint, body, (dist0, far0, z, z, z))
        out_ref[0] = ax
        out_ref[1] = ay
        out_ref[2] = az

    return kernel


def _fps(xyz_cm, start_idx, npoint):
    B, _, N = xyz_cm.shape
    xs = xyz_cm[:, 0, :]
    ys = xyz_cm[:, 1, :]
    zs = xyz_cm[:, 2, :]
    start = start_idx.reshape(B, 1).astype(jnp.int32)
    # TODO(synk): on v7x, a leading size-2 "parallel" grid axis over B-halves would use both TCs.
    out = pl.pallas_call(
        _make_fps_kernel(npoint, N, B),
        out_shape=jax.ShapeDtypeStruct((3, B, npoint), jnp.float32),
        grid=(1,),
        in_specs=[pl.BlockSpec((B, 1), lambda i: (0, 0)),
                  pl.BlockSpec((B, N), lambda i: (0, 0)),
                  pl.BlockSpec((B, N), lambda i: (0, 0)),
                  pl.BlockSpec((B, N), lambda i: (0, 0))],
        out_specs=pl.BlockSpec((3, B, npoint), lambda i: (0, 0, 0)),
        compiler_params=pltpu.CompilerParams(vmem_limit_bytes=_VMEM_LIMIT),
    )(start, xs, ys, zs)
    return jnp.transpose(out, (1, 0, 2))                            # [B, 3, npoint]


# --------------------------------------------------------------------------------------
# 2) ball query (rank-once) + stacked selection matmul reassociated through conv0
# --------------------------------------------------------------------------------------
def _make_group_conv0_kernel(radius, nsample):
    r2 = float(radius) * float(radius)

    def kernel(xt_ref, nx_ref, q_ref, off_ref, lt_ref,
               y_ref, s_ref, ss_ref, mx_ref, mn_ref):
        st = pl.program_id(1)
        xt = xt_ref[0]                                              # [3, N]  f32
        nx = nx_ref[0]                                              # [ts, 3] f32
        qb = q_ref[0]                                               # [N, C0p] bf16
        off = off_ref[0]                                            # [ts, C0p] f32
        lt = lt_ref[...]                                            # [N, N] bf16, (m <= n)
        ts = nx.shape[0]

        # squared distances to all points (clamped)
        cross = jnp.dot(nx, xt, preferred_element_type=jnp.float32)  # [ts, N]
        d = (jnp.sum(nx * nx, axis=1, keepdims=True)
             + jnp.sum(xt * xt, axis=0, keepdims=True) - 2.0 * cross)
        d = jnp.maximum(d, 0.0)
        within = d <= r2                                            # [ts, N]

        # rank of each in-radius point among in-radius points of smaller index:
        # exact integer counts via 0/1-bf16 matmul with a lower-triangular ones matrix (f32 acc).
        rank = jnp.dot(within.astype(jnp.bfloat16), lt,
                       preferred_element_type=jnp.float32)          # [ts, N]
        count = jnp.sum(within.astype(jnp.float32), axis=1, keepdims=True)  # [ts, 1]

        sel0 = jnp.logical_and(within, rank == 1.0)
        sels = []
        for k in range(nsample):
            selk = jnp.logical_and(within, rank == float(k + 1))
            if k:
                selk = jnp.where(count >= float(k + 1), selk, sel0)  # pad with first point
            sels.append(selk.astype(jnp.bfloat16))
        sel = jnp.concatenate(sels, axis=0)                          # [K*ts, N]

        # one stacked selection matmul, reassociated through conv0
        y2 = jnp.dot(sel, qb, preferred_element_type=jnp.float32)    # [K*ts, C0p]
        y3 = y2.reshape(nsample, ts, -1) + off[None]                 # [K, ts, C0p]

        y_ref[0] = y3.astype(jnp.bfloat16)
        mx_ref[0] = jnp.max(y3, axis=0)
        mn_ref[0] = jnp.min(y3, axis=0)

        @pl.when(st == 0)
        def _():
            s_ref[...] = jnp.zeros_like(s_ref)
            ss_ref[...] = jnp.zeros_like(ss_ref)

        s_ref[0] += jnp.sum(jnp.sum(y3, axis=0), axis=0, keepdims=True)
        ss_ref[0] += jnp.sum(jnp.sum(y3 * y3, axis=0), axis=0, keepdims=True)

    return kernel


def _group_conv0(xyz_cm, new_xyz_r, q_bf, off, lt, *, radius, nsample, ts):
    B, _, N = xyz_cm.shape
    S = new_xyz_r.shape[1]
    C0p = q_bf.shape[2]
    n_st = S // ts
    out_shape = (
        jax.ShapeDtypeStruct((B, nsample, S, C0p), jnp.bfloat16),   # activations in bf16
        jax.ShapeDtypeStruct((B, 1, C0p), jnp.float32),             # sum
        jax.ShapeDtypeStruct((B, 1, C0p), jnp.float32),             # sumsq
        jax.ShapeDtypeStruct((B, S, C0p), jnp.float32),             # max over K
        jax.ShapeDtypeStruct((B, S, C0p), jnp.float32),             # min over K
    )
    in_specs = [
        pl.BlockSpec((1, 3, N), lambda b, st: (b, 0, 0)),
        pl.BlockSpec((1, ts, 3), lambda b, st: (b, st, 0)),
        pl.BlockSpec((1, N, C0p), lambda b, st: (b, 0, 0)),
        pl.BlockSpec((1, ts, C0p), lambda b, st: (b, st, 0)),
        # TODO(synk): for very large N the [N,N] rank matrix should be tiled or replaced by a
        # log-depth prefix-sum; fine at typical PointNet++ sizes.
        pl.BlockSpec((N, N), lambda b, st: (0, 0)),
    ]
    out_specs = (
        pl.BlockSpec((1, nsample, ts, C0p), lambda b, st: (b, 0, st, 0)),
        pl.BlockSpec((1, 1, C0p), lambda b, st: (b, 0, 0)),
        pl.BlockSpec((1, 1, C0p), lambda b, st: (b, 0, 0)),
        pl.BlockSpec((1, ts, C0p), lambda b, st: (b, st, 0)),
        pl.BlockSpec((1, ts, C0p), lambda b, st: (b, st, 0)),
    )
    return pl.pallas_call(
        _make_group_conv0_kernel(radius, nsample),
        out_shape=out_shape,
        grid=(B, n_st),
        in_specs=in_specs,
        out_specs=out_specs,
        compiler_params=pltpu.CompilerParams(
            dimension_semantics=("parallel", "arbitrary"),
            vmem_limit_bytes=_VMEM_LIMIT),
    )(xyz_cm, new_xyz_r, q_bf, off, lt)


# --------------------------------------------------------------------------------------
# 3) BN(train)+ReLU fused with the next 1x1 conv; emits sum/sumsq partials and max/min over K
# --------------------------------------------------------------------------------------
def _mlp_kernel(x_ref, scale_ref, shift_ref, w_ref, b_ref,
                y_ref, s_ref, ss_ref, mx_ref, mn_ref):
    st = pl.program_id(1)
    x = x_ref[0]                                                    # [K, ts, Cin] bf16
    a = jnp.maximum(x * scale_ref[...][None] + shift_ref[...][None], 0.0)   # f32
    k, ts, cin = a.shape
    a2 = a.reshape(k * ts, cin).astype(jnp.bfloat16)
    y2 = jnp.dot(a2, w_ref[...], preferred_element_type=jnp.float32) + b_ref[...]
    y3 = y2.reshape(k, ts, -1)

    y_ref[0] = y3.astype(jnp.bfloat16)
    mx_ref[0] = jnp.max(y3, axis=0)
    mn_ref[0] = jnp.min(y3, axis=0)

    @pl.when(st == 0)
    def _():
        s_ref[...] = jnp.zeros_like(s_ref)
        ss_ref[...] = jnp.zeros_like(ss_ref)

    s_ref[0] += jnp.sum(y2, axis=0, keepdims=True)
    ss_ref[0] += jnp.sum(y2 * y2, axis=0, keepdims=True)


def _bn_relu_conv(y, scale, shift, w_bf, b, *, ts):
    B, K, S, Cin = y.shape
    Cout = w_bf.shape[1]
    n_st = S // ts
    out_shape = (
        jax.ShapeDtypeStruct((B, K, S, Cout), jnp.bfloat16),
        jax.ShapeDtypeStruct((B, 1, Cout), jnp.float32),
        jax.ShapeDtypeStruct((B, 1, Cout), jnp.float32),
        jax.ShapeDtypeStruct((B, S, Cout), jnp.float32),
        jax.ShapeDtypeStruct((B, S, Cout), jnp.float32),
    )
    in_specs = [
        pl.BlockSpec((1, K, ts, Cin), lambda b, st: (b, 0, st, 0)),
        pl.BlockSpec((1, Cin), lambda b, st: (0, 0)),
        pl.BlockSpec((1, Cin), lambda b, st: (0, 0)),
        pl.BlockSpec((Cin, Cout), lambda b, st: (0, 0)),
        pl.BlockSpec((1, Cout), lambda b, st: (0, 0)),
    ]
    out_specs = (
        pl.BlockSpec((1, K, ts, Cout), lambda b, st: (b, 0, st, 0)),
        pl.BlockSpec((1, 1, Cout), lambda b, st: (b, 0, 0)),
        pl.BlockSpec((1, 1, Cout), lambda b, st: (b, 0, 0)),
        pl.BlockSpec((1, ts, Cout), lambda b, st: (b, st, 0)),
        pl.BlockSpec((1, ts, Cout), lambda b, st: (b, st, 0)),
    )
    return pl.pallas_call(
        _mlp_kernel,
        out_shape=out_shape,
        grid=(B, n_st),
        in_specs=in_specs,
        out_specs=out_specs,
        compiler_params=pltpu.CompilerParams(
            dimension_semantics=("parallel", "arbitrary"),
            vmem_limit_bytes=_VMEM_LIMIT),
    )(y, scale, shift, w_bf, b)


# --------------------------------------------------------------------------------------
# wrapper
# --------------------------------------------------------------------------------------
def _bn_affine(psum, pssq, gamma, beta, count, eps=1e-5):
    """Finish training-mode BN from in-kernel per-batch partial sums (tiny reduction)."""
    mean = jnp.sum(psum, axis=0) / count                            # [1, C]
    ex2 = jnp.sum(pssq, axis=0) / count
    var = jnp.maximum(ex2 - mean * mean, 0.0)                       # biased variance
    inv = lax.rsqrt(var + eps)
    scale = gamma * inv
    shift = beta - mean * scale
    return scale, shift


def pointnet_set_abstraction(xyz, points, params, *, npoint, radius, nsample,
                             group_all=False, start_idx=None):
    """xyz:[B,3,N], points:[B,D,N] -> (new_xyz:[B,3,npoint], new_points:[B,mlp[-1],npoint])."""
    if group_all or points is None:
        # TODO(synk): group_all=True (sample_and_group_all) and points=None branches not implemented.
        raise NotImplementedError("only group_all=False with points provided is implemented")

    B, _, N = xyz.shape
    xyz_cm = xyz.astype(jnp.float32)                                # [B, 3, N]
    xyz_r = jnp.transpose(xyz_cm, (0, 2, 1))                        # [B, N, 3]
    pts_r = jnp.transpose(points, (0, 2, 1)).astype(jnp.float32)    # [B, N, D]
    if start_idx is None:
        # TODO(synk): torch uses randint(0, N) per batch; caller may pass random starts.
        start_idx = jnp.zeros((B,), jnp.int32)

    # stage 1: farthest point sampling -> new_xyz
    new_xyz = _fps(xyz_cm, start_idx, npoint)                       # [B, 3, npoint]
    new_xyz_r = jnp.transpose(new_xyz, (0, 2, 1))                   # [B, npoint, 3]

    ts = _choose_s_tile(npoint)
    count = float(B * nsample * npoint)
    hp = jax.lax.Precision.HIGHEST

    # conv0 weights, padded to lane-dense width; concat fused by splitting W0
    w0, b0 = params[0][0], params[0][1]
    C0p = _round_up(w0.shape[1], 128)
    w0p = _pad_last(w0, C0p)                                        # [3+D, C0p]
    b0p = _pad_last(b0, C0p)                                        # [1, C0p]
    w0a, w0b = w0p[:3, :], w0p[3:, :]

    # reassociated conv0 (precomputed once, tiny):
    #   q[n]  = xyz[n] @ W0a + pts[n] @ W0b      (per point)
    #   off[s]= b0 - new_xyz[s] @ W0a
    q = (jnp.einsum('bnc,co->bno', xyz_r, w0a, precision=hp)
         + jnp.einsum('bnd,do->bno', pts_r, w0b, precision=hp)).astype(jnp.bfloat16)
    off = b0p - jnp.einsum('bsc,co->bso', new_xyz_r, w0a, precision=hp)
    lt = (jnp.arange(N)[:, None] <= jnp.arange(N)[None, :]).astype(jnp.bfloat16)  # [N, N]

    # stage 2: ball query (rank-once) + stacked selection matmul + conv0
    y, psum, pssq, ymax, ymin = _group_conv0(
        xyz_cm, new_xyz_r, q, off, lt, radius=radius, nsample=nsample, ts=ts)

    gammas = [_pad_last(p[2], _round_up(p[0].shape[1], 128)) for p in params]
    betas = [_pad_last(p[3], _round_up(p[0].shape[1], 128)) for p in params]

    # stage 3: remaining MLP layers (prev BN+ReLU fused with this conv)
    for i in range(1, len(params)):
        scale, shift = _bn_affine(psum, pssq, gammas[i - 1], betas[i - 1], count)
        w_i, b_i = params[i][0], params[i][1]
        Cin_p = y.shape[-1]
        Cout_p = _round_up(w_i.shape[1], 128)
        w_ip = jnp.zeros((Cin_p, Cout_p), jnp.float32)
        w_ip = w_ip.at[:w_i.shape[0], :w_i.shape[1]].set(w_i).astype(jnp.bfloat16)
        b_ip = _pad_last(b_i, Cout_p)
        y, psum, pssq, ymax, ymin = _bn_relu_conv(y, scale, shift, w_ip, b_ip, ts=ts)

    # stage 4 (fused): final BN + ReLU + max over nsample, done on the tiny [B,S,C] max/min
    # (relu is monotone: max_k relu(s*y_k+t) = relu(s*ymax+t) if s>=0 else relu(s*ymin+t))
    scale, shift = _bn_affine(psum, pssq, gammas[-1], betas[-1], count)
    ysel = jnp.where(scale >= 0.0, ymax, ymin)                      # [B, S, Cp]
    pooled = jnp.maximum(ysel * scale + shift, 0.0)
    pooled = pooled[..., :params[-1][0].shape[1]]                   # drop channel padding
    return new_xyz, jnp.transpose(pooled, (0, 2, 1))


# --------------------------------------------------------------------------------------
# synthetic parameters + pure-JAX reference (mirrors the torch module) + demo
# --------------------------------------------------------------------------------------
def init_params(key, in_channel, mlp):
    params = []
    last = in_channel
    for out_c in mlp:
        key, k1, k2 = jax.random.split(key, 3)
        bound = 1.0 / (last ** 0.5)
        w = jax.random.uniform(k1, (last, out_c), jnp.float32, -bound, bound)  # [Cin, Cout]
        b = jax.random.uniform(k2, (1, out_c), jnp.float32, -bound, bound)
        gamma = jnp.ones((1, out_c), jnp.float32)
        beta = jnp.zeros((1, out_c), jnp.float32)
        params.append((w, b, gamma, beta))
        last = out_c
    return params


def _reference_forward(xyz, points, params, npoint, radius, nsample, start_idx):
    hp = jax.lax.Precision.HIGHEST
    xyz_r = jnp.transpose(xyz, (0, 2, 1))
    pts_r = jnp.transpose(points, (0, 2, 1))
    B, N, _ = xyz_r.shape

    def fps_one(x, s0):
        dist = jnp.full((N,), 1e10, jnp.float32)
        far = s0
        idxs = []
        for _ in range(npoint):
            idxs.append(far)
            c = x[far]
            d = jnp.sum((x - c) ** 2, axis=-1)
            dist = jnp.minimum(dist, d)
            far = jnp.argmax(dist)
        return jnp.stack(idxs)

    fps_idx = jax.vmap(fps_one)(xyz_r, start_idx)
    new_xyz = jax.vmap(lambda p, i: p[i])(xyz_r, fps_idx)              # [B, S, 3]

    d = jnp.sum((new_xyz[:, :, None, :] - xyz_r[:, None, :, :]) ** 2, axis=-1)  # [B, S, N]
    arange = jnp.arange(N, dtype=jnp.int32)[None, None, :]
    gidx = jnp.where(d > radius ** 2, N, arange)
    gidx = jnp.sort(gidx, axis=-1)[:, :, :nsample]
    first = gidx[:, :, :1]
    gidx = jnp.where(gidx == N, jnp.broadcast_to(first, gidx.shape), gidx)

    g_xyz = jax.vmap(lambda p, i: p[i])(xyz_r, gidx) - new_xyz[:, :, None, :]
    g_pts = jax.vmap(lambda p, i: p[i])(pts_r, gidx)
    x = jnp.concatenate([g_xyz, g_pts], axis=-1)                       # [B, S, K, 3+D]

    for (w, b, g, bt) in params:
        y = jnp.einsum('bskc,co->bsko', x, w, precision=hp) + b
        mean = jnp.mean(y, axis=(0, 1, 2), keepdims=True)
        var = jnp.mean((y - mean) ** 2, axis=(0, 1, 2), keepdims=True)
        x = jnp.maximum((y - mean) / jnp.sqrt(var + 1e-5) * g + bt, 0.0)

    out = jnp.max(x, axis=2)                                           # [B, S, C_last]
    return jnp.transpose(new_xyz, (0, 2, 1)), jnp.transpose(out, (0, 2, 1))


if __name__ == "__main__":
    key = jax.random.PRNGKey(0)
    B, N, D = 2, 32, 4
    npoint, radius, nsample = 8, 1.5, 8
    mlp = [32, 64]
    in_channel = D + 3

    k1, k2, k3, kp = jax.random.split(key, 4)
    xyz = jax.random.normal(k1, (B, 3, N), jnp.float32)
    points = jax.random.normal(k2, (B, D, N), jnp.float32)
    start_idx = jax.random.randint(k3, (B,), 0, N, dtype=jnp.int32)
    params = init_params(kp, in_channel, mlp)

    new_xyz, new_points = pointnet_set_abstraction(
        xyz, points, params, npoint=npoint, radius=radius, nsample=nsample,
        group_all=False, start_idx=start_idx)
    jax.block_until_ready((new_xyz, new_points))

    assert new_xyz.shape == (B, 3, npoint), new_xyz.shape
    assert new_points.shape == (B, mlp[-1], npoint), new_points.shape
    assert bool(jnp.all(jnp.isfinite(new_points)))

    ref_xyz, ref_points = _reference_forward(
        xyz, points, params, npoint, radius, nsample, start_idx)
    assert float(jnp.max(jnp.abs(new_xyz - ref_xyz))) < 1e-4
    err = float(jnp.max(jnp.abs(new_points - ref_points)))
    assert err < 0.2, f"max abs err vs reference = {err}"   # bf16 activations / MXU inputs

    print("KERNEL_OK")
</pallas_src>

<mosaic_0001>
module attributes {stable_mosaic.version = 11 : i64} {
  func.func @kernel(%arg0: i32, %arg1: memref<2x1xi32, #tpu.memory_space<vmem>>, %arg2: memref<2x32xf32, #tpu.memory_space<vmem>>, %arg3: memref<2x32xf32, #tpu.memory_space<vmem>>, %arg4: memref<2x32xf32, #tpu.memory_space<vmem>>, %arg5: memref<3x2x8xf32, #tpu.memory_space<vmem>>) attributes {dimension_semantics = [#tpu.dimension_semantics<arbitrary>], iteration_bounds = array<i64: 1>, scalar_prefetch = 0 : i64, scratch_operands = 0 : i64, tpu.core_type = #tpu.core_type<tc>, window_params = [{pipeline_mode = #tpu.pipeline_mode<synchronous>, transform_indices = @transform_0, window_bounds = array<i64: 2, 1>}, {pipeline_mode = #tpu.pipeline_mode<synchronous>, transform_indices = @transform_1, window_bounds = array<i64: 2, 32>}, {pipeline_mode = #tpu.pipeline_mode<synchronous>, transform_indices = @transform_2, window_bounds = array<i64: 2, 32>}, {pipeline_mode = #tpu.pipeline_mode<synchronous>, transform_indices = @transform_3, window_bounds = array<i64: 2, 32>}, {pipeline_mode = #tpu.pipeline_mode<synchronous>, transform_indices = @transform_4, window_bounds = array<i64: 3, 2, 8>}]} {
    %c0 = arith.constant 0 : index
    %c0_0 = arith.constant 0 : index
    %0 = vector.load %arg2[%c0, %c0_0] : memref<2x32xf32, #tpu.memory_space<vmem>>, vector<2x32xf32>
    %c0_1 = arith.constant 0 : index
    %c0_2 = arith.constant 0 : index
    %1 = vector.load %arg3[%c0_1, %c0_2] : memref<2x32xf32, #tpu.memory_space<vmem>>, vector<2x32xf32>
    %c0_3 = arith.constant 0 : index
    %c0_4 = arith.constant 0 : index
    %2 = vector.load %arg4[%c0_3, %c0_4] : memref<2x32xf32, #tpu.memory_space<vmem>>, vector<2x32xf32>
    %3 = tpu.iota {dimensions = array<i32: 1>} : vector<2x32xi32>
    %4 = arith.sitofp %3 : vector<2x32xi32> to vector<2x32xf32>
    %5 = tpu.iota {dimensions = array<i32: 1>} : vector<2x8xi32>
    %c0_5 = arith.constant 0 : index
    %c0_6 = arith.constant 0 : index
    %6 = vector.load %arg1[%c0_5, %c0_6] : memref<2x1xi32, #tpu.memory_space<vmem>>, vector<2x1xi32>
    %cst = arith.constant 1.000000e+10 : f32
    %7 = vector.broadcast %cst : f32 to vector<2x32xf32>
    %cst_7 = arith.constant 0.000000e+00 : f32
    %8 = vector.broadcast %cst_7 : f32 to vector<2x8xf32>
    %c0_i32 = arith.constant 0 : i32
    %c8_i32 = arith.constant 8 : i32
    %9 = arith.addi %c0_i32, %c8_i32 : i32
    %c1_i32 = arith.constant 1 : i32
    %10:5 = scf.for %arg6 = %c0_i32 to %9 step %c1_i32 iter_args(%arg7 = %7, %arg8 = %6, %arg9 = %8, %arg10 = %8, %arg11 = %8) -> (vector<2x32xf32>, vector<2x1xi32>, vector<2x8xf32>, vector<2x8xf32>, vector<2x8xf32>)  : i32 {
      %20 = vector.broadcast %arg8 : vector<2x1xi32> to vector<2x32xi32>
      %21 = arith.cmpi eq, %3, %20 : vector<2x32xi32>
      %22 = arith.extui %21 : vector<2x32xi1> to vector<2x32xi32>
      %23 = arith.sitofp %22 : vector<2x32xi32> to vector<2x32xf32>
      %24 = arith.mulf %0, %23 : vector<2x32xf32>
      %cst_16 = arith.constant dense<0.000000e+00> : vector<2xf32>
      %25 = vector.multi_reduction <add>, %24, %cst_16 [1] : vector<2x32xf32> to vector<2xf32>
      %26 = vector.shape_cast %25 : vector<2xf32> to vector<2x1xf32>
      %27 = arith.mulf %1, %23 : vector<2x32xf32>
      %cst_17 = arith.constant dense<0.000000e+00> : vector<2xf32>
      %28 = vector.multi_reduction <add>, %27, %cst_17 [1] : vector<2x32xf32> to vector<2xf32>
      %29 = vector.shape_cast %28 : vector<2xf32> to vector<2x1xf32>
      %30 = arith.mulf %2, %23 : vector<2x32xf32>
      %cst_18 = arith.constant dense<0.000000e+00> : vector<2xf32>
      %31 = vector.multi_reduction <add>, %30, %cst_18 [1] : vector<2x32xf32> to vector<2xf32>
      %32 = vector.shape_cast %31 : vector<2xf32> to vector<2x1xf32>
      %33 = vector.broadcast %arg6 : i32 to vector<2x8xi32>
      %34 = arith.cmpi eq, %5, %33 : vector<2x8xi32>
      %35 = arith.extui %34 : vector<2x8xi1> to vector<2x8xi32>
      %36 = arith.sitofp %35 : vector<2x8xi32> to vector<2x8xf32>
      %37 = vector.broadcast %26 : vector<2x1xf32> to vector<2x8xf32>
      %38 = arith.mulf %37, %36 : vector<2x8xf32>
      %39 = arith.addf %arg9, %38 : vector<2x8xf32>
      %40 = vector.broadcast %29 : vector<2x1xf32> to vector<2x8xf32>
      %41 = arith.mulf %40, %36 : vector<2x8xf32>
      %42 = arith.addf %arg10, %41 : vector<2x8xf32>
      %43 = vector.broadcast %32 : vector<2x1xf32> to vector<2x8xf32>
      %44 = arith.mulf %43, %36 : vector<2x8xf32>
      %45 = arith.addf %arg11, %44 : vector<2x8xf32>
      %46 = vector.broadcast %26 : vector<2x1xf32> to vector<2x32xf32>
      %47 = arith.subf %0, %46 : vector<2x32xf32>
      %48 = arith.mulf %47, %47 : vector<2x32xf32>
      %49 = vector.broadcast %29 : vector<2x1xf32> to vector<2x32xf32>
      %50 = arith.subf %1, %49 : vector<2x32xf32>
      %51 = arith.mulf %50, %50 : vector<2x32xf32>
      %52 = arith.addf %48, %51 : vector<2x32xf32>
      %53 = vector.broadcast %32 : vector<2x1xf32> to vector<2x32xf32>
      %54 = arith.subf %2, %53 : vector<2x32xf32>
      %55 = arith.mulf %54, %54 : vector<2x32xf32>
      %56 = arith.addf %52, %55 : vector<2x32xf32>
      %57 = arith.minimumf %arg7, %56 : vector<2x32xf32>
      %cst_19 = arith.constant dense<0xFF800000> : vector<2xf32>
      %58 = vector.multi_reduction <maximumf>, %57, %cst_19 [1] : vector<2x32xf32> to vector<2xf32>
      %59 = vector.shape_cast %58 : vector<2xf32> to vector<2x1xf32>
      %60 = vector.broadcast %59 : vector<2x1xf32> to vector<2x32xf32>
      %61 = arith.cmpf oeq, %57, %60 : vector<2x32xf32>
      %cst_20 = arith.constant 3.200000e+01 : f32
      %62 = vector.broadcast %cst_20 : f32 to vector<2x32xf32>
      %63 = arith.select %61, %4, %62 : vector<2x32xi1>, vector<2x32xf32>
      %cst_21 = arith.constant dense<0x7F800000> : vector<2xf32>
      %64 = vector.multi_reduction <minimumf>, %63, %cst_21 [1] : vector<2x32xf32> to vector<2xf32>
      %65 = vector.shape_cast %64 : vector<2xf32> to vector<2x1xf32>
      %66 = arith.fptosi %65 : vector<2x1xf32> to vector<2x1xi32>
      scf.yield %57, %66, %39, %42, %45 : vector<2x32xf32>, vector<2x1xi32>, vector<2x8xf32>, vector<2x8xf32>, vector<2x8xf32>
    }
    %c8_i32_8 = arith.constant 8 : i32
    %c0_9 = arith.constant 0 : index
    %c0_10 = arith.constant 0 : index
    %c0_11 = arith.constant 0 : index
    %11 = vector.load %arg5[%c0_9, %c0_10, %c0_11] : memref<3x2x8xf32, #tpu.memory_space<vmem>>, vector<1x2x8xf32>
    %12 = vector.shape_cast %11 : vector<1x2x8xf32> to vector<2x8xf32>
    %13 = vector.shape_cast %10#2 : vector<2x8xf32> to vector<1x2x8xf32>
    tpu.vector_store %arg5[%c0_9, %c0_10, %c0_11], %13 {strides = array<i32>} : memref<3x2x8xf32, #tpu.memory_space<vmem>>, vector<1x2x8xf32>,
    %c1 = arith.constant 1 : index
    %c0_12 = arith.constant 0 : index
    %c0_13 = arith.constant 0 : index
    %14 = vector.load %arg5[%c1, %c0_12, %c0_13] : memref<3x2x8xf32, #tpu.memory_space<vmem>>, vector<1x2x8xf32>
    %15 = vector.shape_cast %14 : vector<1x2x8xf32> to vector<2x8xf32>
    %16 = vector.shape_cast %10#3 : vector<2x8xf32> to vector<1x2x8xf32>
    tpu.vector_store %arg5[%c1, %c0_12, %c0_13], %16 {strides = array<i32>} : memref<3x2x8xf32, #tpu.memory_space<vmem>>, vector<1x2x8xf32>,
    %c2 = arith.constant 2 : index
    %c0_14 = arith.constant 0 : index
    %c0_15 = arith.constant 0 : index
    %17 = vector.load %arg5[%c2, %c0_14, %c0_15] : memref<3x2x8xf32, #tpu.memory_space<vmem>>, vector<1x2x8xf32>
    %18 = vector.shape_cast %17 : vector<1x2x8xf32> to vector<2x8xf32>
    %19 = vector.shape_cast %10#4 : vector<2x8xf32> to vector<1x2x8xf32>
    tpu.vector_store %arg5[%c2, %c0_14, %c0_15], %19 {strides = array<i32>} : memref<3x2x8xf32, #tpu.memory_space<vmem>>, vector<1x2x8xf32>,
    return
  }
  func.func @transform_0(%arg0: i32) -> (i32, i32) {
    %c0_i32 = arith.constant 0 : i32
    %c0_i32_0 = arith.constant 0 : i32
    %c0_i32_1 = arith.constant 0 : i32
    return %c0_i32, %c0_i32_0 : i32, i32
  }
  func.func @transform_1(%arg0: i32) -> (i32, i32) {
    %c0_i32 = arith.constant 0 : i32
    %c0_i32_0 = arith.constant 0 : i32
    %c0_i32_1 = arith.constant 0 : i32
    return %c0_i32, %c0_i32_0 : i32, i32
  }
  func.func @transform_2(%arg0: i32) -> (i32, i32) {
    %c0_i32 = arith.constant 0 : i32
    %c0_i32_0 = arith.constant 0 : i32
    %c0_i32_1 = arith.constant 0 : i32
    return %c0_i32, %c0_i32_0 : i32, i32
  }
  func.func @transform_3(%arg0: i32) -> (i32, i32) {
    %c0_i32 = arith.constant 0 : i32
    %c0_i32_0 = arith.constant 0 : i32
    %c0_i32_1 = arith.constant 0 : i32
    return %c0_i32, %c0_i32_0 : i32, i32
  }
  func.func @transform_4(%arg0: i32) -> (i32, i32, i32) {
    %c0_i32 = arith.constant 0 : i32
    %c0_i32_0 = arith.constant 0 : i32
    %c0_i32_1 = arith.constant 0 : i32
    %c0_i32_2 = arith.constant 0 : i32
    return %c0_i32, %c0_i32_0, %c0_i32_1 : i32, i32, i32
  }
}

</mosaic_0001>

<llo_original>
// kernel: tpu_custom_call.1
$region0: #{tpu_custom_call.1}
  #allocation0 [shape = 'u32[]', space=smem, size = 0x4, offset = 0x4, fixed_abs, tag = 'smem constant byte address 0x4 - core index']
  #allocation1 [shape = 'u32[144,128]{1,0:T(1,128)}', space=vmem, size = 0x12000, scoped, tag = 'internal scratch']
  %s0 = inlined_call_operand.vmem [shape: s32[2,1], index: 0, kind: input, shape index: {}]
  %s1 = inlined_call_operand.vmem [shape: f32[2,32], index: 1, kind: input, shape index: {}]
  %s2 = inlined_call_operand.vmem [shape: f32[2,32], index: 2, kind: input, shape index: {}]
  %s3 = inlined_call_operand.vmem [shape: f32[2,32], index: 3, kind: input, shape index: {}]
  %s4 = inlined_call_operand.hbm [shape: f32[3,2,8], index: 4, kind: output, shape index: {}]
  %s5 = sld [smem:[#allocation0]]
  $region33: #{tpu_custom_call.1} parent=0
    _
  %s7 = ssub.s32 1, %s5
  %s8 = scalar_select 0, %s7, %s5
  $region1: #{tpu_custom_call.1} parent=0
    #allocation2 [shape = 'u8[3072]{0}', space=vmem, size = 0xc00, scoped, tag = 'output window, operand 0, single buffered']
    #allocation3 [shape = 's32[1]{0}', space=sflag, size = 0x4, scoped, tag = 'scoped memory for tpu_custom_call.1']
    %9 = vsyncpa [#allocation3], 0
    // Predicated region
    $region2: #{tpu_custom_call.1} parent=1 // pred_check
      _
    $region3: #{tpu_custom_call.1} parent=1 // pred_check_branch
      %11 = sbr.rel (0) target = $region5
    $region4: #{tpu_custom_call.1} parent=1 // pred_region
      _
    $region5: #{tpu_custom_call.1} parent=1 // pred_fallthru
      _
    // Predicated region
    $region6: #{tpu_custom_call.1} parent=1 // pred_check
      _
    $region7: #{tpu_custom_call.1} parent=1 // pred_check_branch
      %13 = sbr.rel (0) target = $region9
    $region8: #{tpu_custom_call.1} parent=1 // pred_region
      _
    $region9: #{tpu_custom_call.1} parent=1 // pred_fallthru
      _
    // Predicated region
    $region10: #{tpu_custom_call.1} parent=1 // pred_check
      _
    $region11: #{tpu_custom_call.1} parent=1 // pred_check_branch
      %15 = sbr.rel (0) target = $region13
    $region12: #{tpu_custom_call.1} parent=1 // pred_region
      _
    $region13: #{tpu_custom_call.1} parent=1 // pred_fallthru
      _
    // Predicated region
    $region14: #{tpu_custom_call.1} parent=1 // pred_check
      _
    $region15: #{tpu_custom_call.1} parent=1 // pred_check_branch
      %17 = sbr.rel (0) target = $region17
    $region16: #{tpu_custom_call.1} parent=1 // pred_region
      _
    $region17: #{tpu_custom_call.1} parent=1 // pred_fallthru
      _
    %v18 = vld [vmem:[%s1] sm:$0x3]
    %v19 = vld [vmem:[%s2] sm:$0x3]
    %v20 = vld [vmem:[%s3] sm:$0x3]
    %v21 = vlaneseq
    %v22 = vand.u32 %v21, 127
    %v23 = vcvt.s32.f32 %v22
    %v24 = vld [vmem:[%s0] sm:$0x3]
    loop: start=0, step=1, limit=8
    $region18: #{tpu_custom_call.1} parent=1 // loop_pre_header
      _
    $region19: #{tpu_custom_call.1} parent=1 // loop_header
      %s26 = sphi 0, %s30
      %p27 = scmp.ge.s32.totalorder %s26, 8
      %v31 = vphi 1e+10, %v73
      %v32 = vphi %v24, %v82
      %v33 = vphi 0.0, %v60
      %v34 = vphi 0.0, %v62
      %v35 = vphi 0.0, %v64
    $region20: #{tpu_custom_call.1} parent=1 // loop_header_branch
      %29 = sbr.rel (%p27) target = $region24
    $region21: #{tpu_custom_call.1} parent=1 // loop_body
      %36 = vset.pattern.permute.xlu0 0
      %37 = vperm.xlu0 %36, %v32
      %v38 = vpop.permute.xlu0 %37
      %vm39 = vcmp.eq.s32.totalorder %v22, %v38
      %v40 = vsel %vm39, 1, 0
      %v41 = vcvt.s32.f32 %v40
      %v42 = vmul.f32 %v18, %v41
      %vm43 = vcmask 254976
      %v44 = vsel %vm43, %v42, 0.0
      %45 = vadd.xlane.f32.xlu0 %v44
      %v46 = vpop.xlane.xlu0 %45
      %v47 = vmul.f32 %v19, %v41
      %v48 = vsel %vm43, %v47, 0.0
      %49 = vadd.xlane.f32.xlu0 %v48
      %v50 = vpop.xlane.xlu0 %49
      %v51 = vmul.f32 %v20, %v41
      %v52 = vsel %vm43, %v51, 0.0
      %53 = vadd.xlane.f32.xlu0 %v52
      %v54 = vpop.xlane.xlu0 %53
      %v55 = vstv %s26
      %vm56 = vcmp.eq.s32.totalorder %v22, %v55
      %v57 = vsel %vm56, 1, 0
      %v58 = vcvt.s32.f32 %v57
      %v59 = vmul.f32 %v46, %v58
      %v60 = vadd.f32 %v33, %v59
      %v61 = vmul.f32 %v50, %v58
      %v62 = vadd.f32 %v34, %v61
      %v63 = vmul.f32 %v54, %v58
      %v64 = vadd.f32 %v35, %v63
      %v65 = vsub.f32 %v18, %v46
      %v66 = vmul.f32 %v65, %v65
      %v67 = vsub.f32 %v19, %v50
      %v68 = vmul.f32 %v67, %v67
      %v69 = vadd.f32 %v66, %v68
      %v70 = vsub.f32 %v20, %v54
      %v71 = vmul.f32 %v70, %v70
      %v72 = vadd.f32 %v69, %v71
      %v73 = vmin.f32 %v31, %v72
      %v74 = vsel %vm43, %v73, -inf
      %75 = vmax.xlane.f32.xlu0 %v74
      %v76 = vpop.xlane.xlu0 %75
      %vm77 = vcmp.eq.f32.partialorder %v73, %v76
      %v78 = vsel %vm77, %v23, 32.0
      %v79 = vsel %vm43, %v78, inf
      %80 = vmin.xlane.f32.xlu0 %v79
      %v81 = vpop.xlane.xlu0 %80
      %v82 = vcvt.f32.s32.to.zero.pseudo %v81
    $region22: #{tpu_custom_call.1} parent=1 // loop_footer
      %s30 = sadd.s32 1, %s26
    $region23: #{tpu_custom_call.1} parent=1 // loop_footer_branch
      %25 = sbr.rel target = $region19
    $region24: #{tpu_custom_call.1} parent=1 // loop_exit
      _
    %vm83 = vcmask 58368
    %84 = vst.msk [vmem:[#allocation2] sm:$0x3] %vm83, %v33
    %s85 = scalar_lea.vmem [#allocation2], 2
    %86 = vst.msk [vmem:[%s85] sm:$0x3] %vm83, %v34
    %s87 = scalar_lea.vmem [#allocation2], 4
    %88 = vst.msk [vmem:[%s87] sm:$0x3] %vm83, %v35
    // Predicated region
    $region25: #{tpu_custom_call.1} parent=1 // pred_check
      _
    $region26: #{tpu_custom_call.1} parent=1 // pred_check_branch
      %90 = sbr.rel (0) target = $region28
    $region27: #{tpu_custom_call.1} parent=1 // pred_region
      %s92 = ssub.s32 96, 96
      %93 = vsyncadd [#allocation3], %s92
      %s94 = sshll.u32 [#allocation2], 4
      %s95 = int_to_ptr.vmem [resolvable:$true] %s94
      %100 = dma.vmem_to_hbm [thread:$0]  %s95, 96, %s4, [#allocation3], 32, 32, 2
    $region28: #{tpu_custom_call.1} parent=1 // pred_fallthru
      _
    // Predicated region
    $region29: #{tpu_custom_call.1} parent=1 // pred_check
      _
    $region30: #{tpu_custom_call.1} parent=1 // pred_check_branch
      %102 = sbr.rel (0) target = $region32
    $region31: #{tpu_custom_call.1} parent=1 // pred_region
      %103 = dma.done [#allocation3], 96
    $region32: #{tpu_custom_call.1} parent=1 // pred_fallthru
      _
    %104 = vsyncpa [#allocation3], 1

</llo_original>
